<compile_context>
chip_gen: v7x
topology: tpu7x:2x2x1
jax: 0.10.0
libtpu: 0.0.40
codegen_flags: <defaults>
</compile_context>

<pallas_src>
import functools

import jax
import jax.numpy as jnp
from jax import lax
from jax.experimental import pallas as pl
from jax.experimental.pallas import tpu as pltpu

LANES = 128                 # lane (minor) dimension of every tile
SUBS = 16                   # sublane padding unit (also bf16's min tile rows)
PAD_UNIT = SUBS * LANES     # flat arrays are padded to a multiple of this
ACC_ROWS = 8                # rows of the tiny resident accumulator (4 KiB f32)
MAX_CHUNK_ROWS = 512        # compute rows per inner step (bounds temporaries)


def _cdiv(a, b):
    return -(-a // b)


def _device_config():
    """(max_tile_rows, n_slices) tuned per TPU generation (best effort)."""
    try:
        kind = jax.devices()[0].device_kind.lower()
    except Exception:
        kind = ""
    single_tc = ("v5 lite" in kind) or ("v5e" in kind) or ("v6" in kind)
    n_slices_max = 1 if single_tc else 2        # v4 / v5p / v7x: 2 TensorCores
    if ("v5 lite" in kind) or ("v5e" in kind):
        max_rows = 2048     # EUP-bound chip; stays well under 16 MiB scoped VMEM
    else:
        max_rows = 4096     # ~2 MiB per input per grid step (f32)
    return max_rows, n_slices_max


def _pick_chunk(tile_rows):
    """Largest chunk row count <= MAX_CHUNK_ROWS dividing tile_rows (mult of 16)."""
    c = MAX_CHUNK_ROWS
    while c >= SUBS:
        if tile_rows % c == 0:
            return c
        c //= 2
    return tile_rows


def _pow_gamma(x, gamma):
    g = float(gamma)
    if g.is_integer():
        return lax.integer_pow(x, int(g))       # VPU multiplies; keeps EUP free
    return x ** jnp.float32(gamma)


def _elementwise_focal(p, t, *, alpha, gamma, logits, binary_targets):
    """Elementwise focal loss.

    binary_targets=False : numerically faithful to the torch module (soft
                           targets supported; 3 EUP transcendentals / element).
    binary_targets=True  : fast path, valid only for t in {0, 1};
                           1 transcendental / element (probabilities) or
                           2 + approx reciprocal (logits).
    """
    p = p.astype(jnp.float32)
    t = t.astype(jnp.float32)
    if logits:
        e = jnp.exp(-jnp.abs(p))                               # EUP #1
        bce = jnp.maximum(p, 0.0) - p * t + jnp.log(1.0 + e)   # EUP #2
        if binary_targets:
            # exp(-bce) == sigmoid(p) when t==1, else 1 - sigmoid(p); reuse e.
            inv = pl.reciprocal(1.0 + e, approx=True)          # EUP slot, ~free
            sig = jnp.where(p >= 0.0, inv, e * inv)
            pt = jnp.where(t > 0.5, sig, 1.0 - sig)
        else:
            pt = jnp.exp(-bce)                                 # EUP #3
    else:
        if binary_targets:
            # For t in {0,1}: bce = -max(log(p_t), -100) and exp(-bce) == p_t
            # (up to the e^-100 clamp, which is below f32 normal range).
            p_true = jnp.where(t > 0.5, p, 1.0 - p)
            bce = -jnp.maximum(jnp.log(p_true), -100.0)        # single EUP op
            pt = p_true
        else:
            # torch.binary_cross_entropy: clamp each log at -100 BEFORE the
            # multiply so 0 * (-inf) never produces NaN (e.g. t==0, p==1).
            log_p = jnp.maximum(jnp.log(p), -100.0)            # EUP #1
            log_1mp = jnp.maximum(jnp.log(1.0 - p), -100.0)    # EUP #2
            bce = -(t * log_p + (1.0 - t) * log_1mp)
            pt = jnp.exp(-bce)                                 # EUP #3
    return jnp.float32(alpha) * _pow_gamma(1.0 - pt, gamma) * bce


def _focal_sum_kernel(p_ref, t_ref, acc_ref, *, alpha, gamma, logits,
                      binary_targets, n_valid, tile_rows, n_inner):
    """Accumulate focal loss into a tiny (1, 8, 128) resident VMEM block.

    grid = (n_slices, n_inner).  The accumulator's block index depends only on
    the leading ("parallel") axis, so it stays resident across the inner
    ("arbitrary") reduction axis.  Compute runs in <=512-row chunks so large
    intermediates never spill.
    """
    c = pl.program_id(0)
    i = pl.program_id(1)

    @pl.when(i == 0)
    def _():
        acc_ref[...] = jnp.zeros_like(acc_ref)

    chunk = _pick_chunk(tile_rows)
    n_chunks = tile_rows // chunk
    row_iota = lax.broadcasted_iota(jnp.int32, (chunk, LANES), 0)
    col_iota = lax.broadcasted_iota(jnp.int32, (chunk, LANES), 1)
    base_row = (c * n_inner + i) * tile_rows     # LOGICAL (unclamped) tile start

    def process(r0):
        f = _elementwise_focal(p_ref[pl.ds(r0, chunk), :],
                               t_ref[pl.ds(r0, chunk), :],
                               alpha=alpha, gamma=gamma, logits=logits,
                               binary_targets=binary_targets)
        # Mask ragged tail / zero-pad / duplicated (clamped) blocks by logical
        # element index.  Select (not multiply) so NaN from garbage OOB reads
        # never leaks into the sum.
        idx = (base_row + r0 + row_iota) * LANES + col_iota
        f = jnp.where(idx < n_valid, f, 0.0)
        # (chunk, 128) -> (8, 128): pure VPU adds into the 4 KiB accumulator.
        acc_ref[...] += f.reshape(chunk // ACC_ROWS, ACC_ROWS, LANES).sum(axis=0)[None]

    if n_chunks == 1:
        process(0)
    else:
        def body(s, carry):
            process(s * chunk)
            return carry
        lax.fori_loop(0, n_chunks, body, 0, unroll=(n_chunks <= 8))


def _focal_elem_kernel(p_ref, t_ref, o_ref, *, alpha, gamma, logits,
                       binary_targets, tile_rows):
    chunk = _pick_chunk(tile_rows)
    n_chunks = tile_rows // chunk

    def process(r0):
        f = _elementwise_focal(p_ref[pl.ds(r0, chunk), :],
                               t_ref[pl.ds(r0, chunk), :],
                               alpha=alpha, gamma=gamma, logits=logits,
                               binary_targets=binary_targets)
        o_ref[pl.ds(r0, chunk), :] = f.astype(o_ref.dtype)

    if n_chunks == 1:
        process(0)
    else:
        def body(s, carry):
            process(s * chunk)
            return carry
        lax.fori_loop(0, n_chunks, body, 0, unroll=(n_chunks <= 8))


def focal_loss(inputs, targets, *, alpha=0.25, gamma=2, logits=False,
               reduce="mean", binary_targets=False):
    """Pallas TPU implementation of FocalLoss.forward (any input shape).

    binary_targets=True enables a fewer-transcendental fast path valid only
    when every target is exactly 0 or 1; the default reproduces the torch
    module's math for arbitrary (soft) targets.
    """
    orig_shape = inputs.shape
    out_dtype = (inputs.dtype if jnp.issubdtype(inputs.dtype, jnp.floating)
                 else jnp.float32)
    n_elem = int(inputs.size)
    assert n_elem > 0, "focal_loss: empty input"

    flat_p = inputs.reshape(-1)
    flat_t = targets.reshape(-1)

    # A 2-D (rows, 128) view needs numel % (16*128) == 0; pad with < 2048 zero
    # elements only when necessary (the pad is masked in-kernel, so the pad
    # VALUE is irrelevant).  This replaces the old full-tile padding copies.
    pad = (-n_elem) % PAD_UNIT
    if pad:
        flat_p = jnp.concatenate([flat_p, jnp.zeros((pad,), flat_p.dtype)])
        flat_t = jnp.concatenate([flat_t, jnp.zeros((pad,), flat_t.dtype)])
    rows = (n_elem + pad) // LANES               # always a multiple of 16
    p2d = flat_p.reshape(rows, LANES)            # native dtype, no forced f32
    t2d = flat_t.reshape(rows, LANES)

    max_rows, n_slices_max = _device_config()
    tm = min(max_rows, rows)                     # multiple of 16, <= rows
    n_blocks = _cdiv(rows, tm)

    bytes_in = p2d.size * p2d.dtype.itemsize + t2d.size * t2d.dtype.itemsize
    n_trans = (2 if logits else 1) if binary_targets else 3

    if reduce in ("mean", "sum"):
        n_slices = n_slices_max if n_blocks >= 2 else 1
        n_inner = _cdiv(n_blocks, n_slices)
        last_block = n_blocks - 1

        def in_block_map(c, i):
            # Clamp: when n_blocks is odd the last slice has one extra step;
            # it re-reads the final block and its contribution is masked to
            # zero in-kernel (logical index >= n_elem).
            return (jnp.minimum(c * n_inner + i, last_block), 0)

        kernel = functools.partial(
            _focal_sum_kernel, alpha=alpha, gamma=gamma, logits=logits,
            binary_targets=binary_targets, n_valid=n_elem, tile_rows=tm,
            n_inner=n_inner)

        cost = pl.CostEstimate(
            flops=12 * rows * LANES,
            transcendentals=n_trans * rows * LANES,
            bytes_accessed=bytes_in + 4 * n_slices * ACC_ROWS * LANES)

        partial = pl.pallas_call(
            kernel,
            out_shape=jax.ShapeDtypeStruct((n_slices, ACC_ROWS, LANES),
                                           jnp.float32),
            grid_spec=pltpu.PrefetchScalarGridSpec(
                num_scalar_prefetch=0,
                grid=(n_slices, n_inner),
                in_specs=[pl.BlockSpec((tm, LANES), in_block_map),
                          pl.BlockSpec((tm, LANES), in_block_map)],
                out_specs=pl.BlockSpec((1, ACC_ROWS, LANES),
                                       lambda c, i: (c, 0, 0)),
            ),
            compiler_params=pltpu.CompilerParams(
                dimension_semantics=("parallel", "arbitrary")),
            cost_estimate=cost,
        )(p2d, t2d)

        total = jnp.sum(partial)                 # ~8 KiB final reduce
        if reduce == "mean":
            total = total / jnp.float32(n_elem)
        return total.astype(out_dtype)

    # Any other `reduce` value: return the elementwise loss (torch behavior).
    kernel = functools.partial(
        _focal_elem_kernel, alpha=alpha, gamma=gamma, logits=logits,
        binary_targets=binary_targets, tile_rows=tm)

    cost = pl.CostEstimate(
        flops=12 * rows * LANES,
        transcendentals=n_trans * rows * LANES,
        bytes_accessed=bytes_in + rows * LANES * jnp.dtype(out_dtype).itemsize)

    f = pl.pallas_call(
        kernel,
        out_shape=jax.ShapeDtypeStruct((rows, LANES), out_dtype),
        grid_spec=pltpu.PrefetchScalarGridSpec(
            num_scalar_prefetch=0,
            grid=(n_blocks,),
            in_specs=[pl.BlockSpec((tm, LANES), lambda i: (i, 0)),
                      pl.BlockSpec((tm, LANES), lambda i: (i, 0))],
            out_specs=pl.BlockSpec((tm, LANES), lambda i: (i, 0)),
        ),
        compiler_params=pltpu.CompilerParams(
            dimension_semantics=("parallel",)),
        cost_estimate=cost,
    )(p2d, t2d)

    flat = f.reshape(-1)
    if pad:
        flat = flat[:n_elem]
    return flat.reshape(orig_shape)


def _ref_focal(inputs, targets, alpha, gamma, logits, reduce):
    """Pure-JAX reference (same math as the torch module)."""
    inputs = inputs.astype(jnp.float32)
    targets = targets.astype(jnp.float32)
    if logits:
        bce = (jnp.maximum(inputs, 0.0) - inputs * targets
               + jnp.log(1.0 + jnp.exp(-jnp.abs(inputs))))
    else:
        bce = -(targets * jnp.maximum(jnp.log(inputs), -100.0)
                + (1.0 - targets) * jnp.maximum(jnp.log(1.0 - inputs), -100.0))
    pt = jnp.exp(-bce)
    loss = alpha * (1.0 - pt) ** gamma * bce
    if reduce == "mean":
        return jnp.mean(loss)
    if reduce == "sum":
        return jnp.sum(loss)
    return loss


if __name__ == "__main__":
    key = jax.random.PRNGKey(0)
    k1, k2, k3, k4 = jax.random.split(key, 4)

    # Small NCHW-shaped inputs (per-anchor class probabilities).
    shape = (2, 4, 16, 16)  # 2048 elements -> no wrapper-side padding at all
    probs = jax.nn.sigmoid(jax.random.normal(k1, shape, dtype=jnp.float32))
    targets = (jax.random.uniform(k2, shape) > 0.5).astype(jnp.float32)

    # 1) Default path: probabilities, reduce='mean', exact torch semantics.
    out_mean = jax.block_until_ready(
        focal_loss(probs, targets, alpha=0.25, gamma=2, logits=False,
                   reduce="mean"))
    ref_mean = _ref_focal(probs, targets, 0.25, 2, False, "mean")
    assert jnp.allclose(out_mean, ref_mean, rtol=1e-5, atol=1e-6), (out_mean, ref_mean)

    # 2) Ragged element count (exercises the in-kernel tail masking),
    #    reduce='sum': exact path and the binary-target fast path.
    shape2 = (3, 5, 7, 11)  # 1155 elements, not a multiple of 128
    probs2 = jax.nn.sigmoid(jax.random.normal(k3, shape2, dtype=jnp.float32))
    targets2 = (jax.random.uniform(k4, shape2) > 0.5).astype(jnp.float32)
    ref_sum = _ref_focal(probs2, targets2, 0.25, 2, False, "sum")
    out_sum = jax.block_until_ready(focal_loss(probs2, targets2, reduce="sum"))
    out_sum_fast = jax.block_until_ready(
        focal_loss(probs2, targets2, reduce="sum", binary_targets=True))
    assert jnp.allclose(out_sum, ref_sum, rtol=1e-5, atol=1e-5), (out_sum, ref_sum)
    assert jnp.allclose(out_sum_fast, ref_sum, rtol=1e-4, atol=1e-4), (out_sum_fast, ref_sum)

    # 3) logits=True, elementwise (reduce='none') path, exact semantics.
    logits_in = jax.random.normal(k3, shape, dtype=jnp.float32)
    out_none = jax.block_until_ready(
        focal_loss(logits_in, targets, logits=True, reduce="none"))
    ref_none = _ref_focal(logits_in, targets, 0.25, 2, True, "none")
    assert out_none.shape == shape
    assert jnp.allclose(out_none, ref_none, rtol=1e-5, atol=1e-6), "elementwise mismatch"

    # 4) logits=True, binary-target fast path (approx reciprocal -> looser tol).
    out_fast = jax.block_until_ready(
        focal_loss(logits_in, targets, logits=True, reduce="mean",
                   binary_targets=True))
    assert jnp.allclose(out_fast, _ref_focal(logits_in, targets, 0.25, 2, True,
                                             "mean"),
                        rtol=2e-2, atol=1e-3), "fast logits path mismatch"

    print("KERNEL_OK")
</pallas_src>

<mosaic_0001>
module attributes {stable_mosaic.version = 11 : i64} {
  func.func @_focal_sum_kernel(%arg0: i32, %arg1: i32, %arg2: memref<16x128xf32, #tpu.memory_space<vmem>>, %arg3: memref<16x128xf32, #tpu.memory_space<vmem>>, %arg4: memref<1x8x128xf32, #tpu.memory_space<vmem>>) attributes {dimension_semantics = [#tpu.dimension_semantics<parallel>, #tpu.dimension_semantics<arbitrary>], iteration_bounds = array<i64: 1, 1>, scalar_prefetch = 0 : i64, scratch_operands = 0 : i64, tpu.core_type = #tpu.core_type<tc>, window_params = [{transform_indices = @transform_0, window_bounds = array<i64: 16, 128>}, {transform_indices = @transform_1, window_bounds = array<i64: 16, 128>}, {transform_indices = @transform_2, window_bounds = array<i64: 1, 8, 128>}]} {
    %c0_i32 = arith.constant 0 : i32
    %0 = arith.cmpi eq, %arg1, %c0_i32 : i32
    %1 = arith.extui %0 : i1 to i32
    %c0_i32_0 = arith.constant 0 : i32
    %2 = arith.cmpi ne, %1, %c0_i32_0 : i32
    scf.if %2 {
      %cst_20 = arith.constant 0.000000e+00 : f32
      %50 = vector.broadcast %cst_20 : f32 to vector<1x8x128xf32>
      %c0_21 = arith.constant 0 : index
      %c0_22 = arith.constant 0 : index
      %c0_23 = arith.constant 0 : index
      %51 = vector.load %arg4[%c0_21, %c0_22, %c0_23] : memref<1x8x128xf32, #tpu.memory_space<vmem>>, vector<1x8x128xf32>
      tpu.vector_store %arg4[%c0_21, %c0_22, %c0_23], %50 {strides = array<i32>} : memref<1x8x128xf32, #tpu.memory_space<vmem>>, vector<1x8x128xf32>,
    } else {
    }
    %3 = tpu.iota {dimensions = array<i32: 0>} : vector<16x128xi32>
    %4 = tpu.iota {dimensions = array<i32: 1>} : vector<16x128xi32>
    %c1_i32 = arith.constant 1 : i32
    %5 = arith.muli %arg0, %c1_i32 : i32
    %6 = arith.addi %5, %arg1 : i32
    %c16_i32 = arith.constant 16 : i32
    %7 = arith.muli %6, %c16_i32 : i32
    %c0 = arith.constant 0 : index
    %c0_1 = arith.constant 0 : index
    %8 = vector.load %arg2[%c0, %c0_1] : memref<16x128xf32, #tpu.memory_space<vmem>>, vector<16x128xf32>
    %c0_2 = arith.constant 0 : index
    %c0_3 = arith.constant 0 : index
    %9 = vector.load %arg3[%c0_2, %c0_3] : memref<16x128xf32, #tpu.memory_space<vmem>>, vector<16x128xf32>
    %10 = math.log %8 : vector<16x128xf32>
    %cst = arith.constant -1.000000e+02 : f32
    %11 = vector.broadcast %cst : f32 to vector<16x128xf32>
    %12 = arith.maximumf %10, %11 : vector<16x128xf32>
    %cst_4 = arith.constant 1.000000e+00 : f32
    %13 = vector.broadcast %cst_4 : f32 to vector<16x128xf32>
    %14 = arith.subf %13, %8 : vector<16x128xf32>
    %15 = math.log %14 : vector<16x128xf32>
    %cst_5 = arith.constant -1.000000e+02 : f32
    %16 = vector.broadcast %cst_5 : f32 to vector<16x128xf32>
    %17 = arith.maximumf %15, %16 : vector<16x128xf32>
    %18 = arith.mulf %9, %12 : vector<16x128xf32>
    %cst_6 = arith.constant 1.000000e+00 : f32
    %19 = vector.broadcast %cst_6 : f32 to vector<16x128xf32>
    %20 = arith.subf %19, %9 : vector<16x128xf32>
    %21 = arith.mulf %20, %17 : vector<16x128xf32>
    %22 = arith.addf %18, %21 : vector<16x128xf32>
    %cst_7 = arith.constant 0.000000e+00 : f32
    %23 = vector.broadcast %cst_7 : f32 to vector<16x128xf32>
    %24 = arith.subf %23, %22 : vector<16x128xf32>
    %cst_8 = arith.constant 0.000000e+00 : f32
    %25 = vector.broadcast %cst_8 : f32 to vector<16x128xf32>
    %26 = arith.subf %25, %24 : vector<16x128xf32>
    %27 = math.exp %26 : vector<16x128xf32>
    %cst_9 = arith.constant 1.000000e+00 : f32
    %28 = vector.broadcast %cst_9 : f32 to vector<16x128xf32>
    %29 = arith.subf %28, %27 : vector<16x128xf32>
    %30 = arith.mulf %29, %29 : vector<16x128xf32>
    %cst_10 = arith.constant 2.500000e-01 : f32
    %31 = vector.broadcast %cst_10 : f32 to vector<16x128xf32>
    %32 = arith.mulf %31, %30 : vector<16x128xf32>
    %33 = arith.mulf %32, %24 : vector<16x128xf32>
    %c0_i32_11 = arith.constant 0 : i32
    %34 = arith.addi %7, %c0_i32_11 : i32
    %35 = vector.broadcast %34 : i32 to vector<16x128xi32>
    %36 = arith.addi %35, %3 : vector<16x128xi32>
    %c128_i32 = arith.constant 128 : i32
    %37 = vector.broadcast %c128_i32 : i32 to vector<16x128xi32>
    %38 = arith.muli %36, %37 : vector<16x128xi32>
    %39 = arith.addi %38, %4 : vector<16x128xi32>
    %c2048_i32 = arith.constant 2048 : i32
    %40 = vector.broadcast %c2048_i32 : i32 to vector<16x128xi32>
    %41 = arith.cmpi slt, %39, %40 : vector<16x128xi32>
    %cst_12 = arith.constant 0.000000e+00 : f32
    %42 = vector.broadcast %cst_12 : f32 to vector<16x128xf32>
    %43 = arith.select %41, %33, %42 : vector<16x128xi1>, vector<16x128xf32>
    %c0_13 = arith.constant 0 : index
    %c0_14 = arith.constant 0 : index
    %c0_15 = arith.constant 0 : index
    %44 = vector.load %arg4[%c0_13, %c0_14, %c0_15] : memref<1x8x128xf32, #tpu.memory_space<vmem>>, vector<1x8x128xf32>
    %45 = vector.shape_cast %43 : vector<16x128xf32> to vector<2x8x128xf32>
    %cst_16 = arith.constant dense<0.000000e+00> : vector<8x128xf32>
    %46 = vector.multi_reduction <add>, %45, %cst_16 [0] : vector<2x8x128xf32> to vector<8x128xf32>
    %47 = vector.shape_cast %46 : vector<8x128xf32> to vector<1x8x128xf32>
    %48 = arith.addf %44, %47 : vector<1x8x128xf32>
    %c0_17 = arith.constant 0 : index
    %c0_18 = arith.constant 0 : index
    %c0_19 = arith.constant 0 : index
    %49 = vector.load %arg4[%c0_17, %c0_18, %c0_19] : memref<1x8x128xf32, #tpu.memory_space<vmem>>, vector<1x8x128xf32>
    tpu.vector_store %arg4[%c0_17, %c0_18, %c0_19], %48 {strides = array<i32>} : memref<1x8x128xf32, #tpu.memory_space<vmem>>, vector<1x8x128xf32>,
    return
  }
  func.func @transform_0(%arg0: i32, %arg1: i32) -> (i32, i32) {
    %c1_i32 = arith.constant 1 : i32
    %0 = arith.muli %arg0, %c1_i32 : i32
    %1 = arith.addi %0, %arg1 : i32
    %c0_i32 = arith.constant 0 : i32
    %2 = arith.minsi %1, %c0_i32 : i32
    %c0_i32_0 = arith.constant 0 : i32
    %c0_i32_1 = arith.constant 0 : i32
    return %2, %c0_i32_0 : i32, i32
  }
  func.func @transform_1(%arg0: i32, %arg1: i32) -> (i32, i32) {
    %c1_i32 = arith.constant 1 : i32
    %0 = arith.muli %arg0, %c1_i32 : i32
    %1 = arith.addi %0, %arg1 : i32
    %c0_i32 = arith.constant 0 : i32
    %2 = arith.minsi %1, %c0_i32 : i32
    %c0_i32_0 = arith.constant 0 : i32
    %c0_i32_1 = arith.constant 0 : i32
    return %2, %c0_i32_0 : i32, i32
  }
  func.func @transform_2(%arg0: i32, %arg1: i32) -> (i32, i32, i32) {
    %c0_i32 = arith.constant 0 : i32
    %c0_i32_0 = arith.constant 0 : i32
    %c0_i32_1 = arith.constant 0 : i32
    return %arg0, %c0_i32, %c0_i32_0 : i32, i32, i32
  }
}

</mosaic_0001>

<llo_original>
// kernel: tpu_custom_call.1
$region0: #{tpu_custom_call.1}
  #allocation0 [shape = 'u32[]', space=smem, size = 0x4, offset = 0x4, fixed_abs, tag = 'smem constant byte address 0x4 - core index']
  #allocation1 [shape = 'u32[144,128]{1,0:T(1,128)}', space=vmem, size = 0x12000, scoped, tag = 'internal scratch']
  %s0 = inlined_call_operand.hbm [shape: f32[16,128], index: 0, kind: input, shape index: {}]
  %s1 = inlined_call_operand.hbm [shape: f32[16,128], index: 1, kind: input, shape index: {}]
  %s2 = inlined_call_operand.hbm [shape: f32[1,8,128], index: 2, kind: output, shape index: {}]
  %s3 = sld [smem:[#allocation0]]
  $region30: #{tpu_custom_call.1} parent=0
    _
  %s5 = ssub.s32 1, %s3
  %s6 = scalar_select 0, %s5, %s3
  $region1: #{tpu_custom_call.1} parent=0
    #allocation2 [shape = 'u8[8192]{0}', space=vmem, size = 0x2000, scoped, tag = 'input window, operand 0, single buffered']
    #allocation3 [shape = 's32[1]{0}', space=sflag, size = 0x4, scoped, tag = 'scoped memory for tpu_custom_call.1']
    #allocation4 [shape = 's32[1]{0}', space=sflag, size = 0x4, scoped, tag = 'scoped memory for tpu_custom_call.1']
    #allocation5 [shape = 'u8[8192]{0}', space=vmem, size = 0x2000, scoped, tag = 'input window, operand 1, single buffered']
    #allocation6 [shape = 's32[1]{0}', space=sflag, size = 0x4, scoped, tag = 'scoped memory for tpu_custom_call.1']
    #allocation7 [shape = 'u8[4096]{0}', space=vmem, size = 0x1000, scoped, tag = 'output window, operand 0, single buffered']
    %7 = vsyncpa [#allocation3], 0
    %8 = vsyncpa [#allocation6], 0
    %9 = vsyncpa [#allocation4], 0
    // Predicated region
    $region2: #{tpu_custom_call.1} parent=1 // pred_check
      _
    $region3: #{tpu_custom_call.1} parent=1 // pred_check_branch
      %11 = sbr.rel (0) target = $region5
    $region4: #{tpu_custom_call.1} parent=1 // pred_region
      %s12 = sadd.s32 0, 0
      %p13 = scmp.lt.s32.totalorder %s12, 0
      %s14 = scalar_select %p13, %s12, 0
      %s15 = smul.u32 2, %s14
      %s17 = ssub.s32 256, 256
      %18 = vsyncadd [#allocation3], %s17
      %s19 = smul.addr %s15, 128
      %s20 = scalar_lea.hbm %s0, %s19
      %s21 = sshll.u32 [#allocation2], 4
      %s22 = int_to_ptr.vmem [resolvable:$true] %s21
      %27 = dma.hbm_to_vmem [thread:$0]  %s20, 256, %s22, [#allocation3], 128, 128, 8
    $region5: #{tpu_custom_call.1} parent=1 // pred_fallthru
      _
    // Predicated region
    $region6: #{tpu_custom_call.1} parent=1 // pred_check
      _
    $region7: #{tpu_custom_call.1} parent=1 // pred_check_branch
      %29 = sbr.rel (0) target = $region9
    $region8: #{tpu_custom_call.1} parent=1 // pred_region
      %s30 = sadd.s32 0, 0
      %p31 = scmp.lt.s32.totalorder %s30, 0
      %s32 = scalar_select %p31, %s30, 0
      %s33 = smul.u32 2, %s32
      %s35 = ssub.s32 256, 256
      %36 = vsyncadd [#allocation6], %s35
      %s37 = smul.addr %s33, 128
      %s38 = scalar_lea.hbm %s1, %s37
      %s39 = sshll.u32 [#allocation5], 4
      %s40 = int_to_ptr.vmem [resolvable:$true] %s39
      %45 = dma.hbm_to_vmem [thread:$0]  %s38, 256, %s40, [#allocation6], 128, 128, 8
    $region9: #{tpu_custom_call.1} parent=1 // pred_fallthru
      _
    // Predicated region
    $region10: #{tpu_custom_call.1} parent=1 // pred_check
      _
    $region11: #{tpu_custom_call.1} parent=1 // pred_check_branch
      %47 = sbr.rel (0) target = $region13
    $region12: #{tpu_custom_call.1} parent=1 // pred_region
      %48 = dma.done [#allocation3], 256
    $region13: #{tpu_custom_call.1} parent=1 // pred_fallthru
      _
    // Predicated region
    $region14: #{tpu_custom_call.1} parent=1 // pred_check
      _
    $region15: #{tpu_custom_call.1} parent=1 // pred_check_branch
      %50 = sbr.rel (0) target = $region17
    $region16: #{tpu_custom_call.1} parent=1 // pred_region
      %51 = dma.done [#allocation6], 256
    $region17: #{tpu_custom_call.1} parent=1 // pred_fallthru
      _
    %s52 = sadd.s32 0, 0
    %p53 = scmp.lt.s32.totalorder %s52, 0
    %s54 = scalar_select %p53, %s52, 0
    %s55 = smul.u32 2, %s54
    %s56 = sadd.s32 0, 0
    %p57 = scmp.lt.s32.totalorder %s56, 0
    %s58 = scalar_select %p57, %s56, 0
    %s59 = smul.u32 2, %s58
    %p60 = scmp.eq.s32.totalorder 0, 0
    // Predicated region
    $region18: #{tpu_custom_call.1} parent=1 // pred_check
      %p61 = pneg %p60
    $region19: #{tpu_custom_call.1} parent=1 // pred_check_branch
      %63 = sbr.rel (%p61) target = $region21
    $region20: #{tpu_custom_call.1} parent=1 // pred_region
      %64 = vst [vmem:[#allocation7] sm:$0xff] 0.0
    $region21: #{tpu_custom_call.1} parent=1 // pred_fallthru
      _
    %v65 = vlaneseq
    %v66 = vshrl.u32 %v65, 7
    %v67 = vadd.s32 %v66, 8
    %v68 = vlaneseq
    %v69 = vand.u32 %v68, 127
    %s70 = sadd.s32 0, 0
    %s71 = smul.u32 %s70, 16
    %v72 = vld [vmem:[#allocation2] sm:$0xff]
    %v73 = vld [vmem:[#allocation2 + $0x8] sm:$0xff]
    %v74 = vld [vmem:[#allocation5] sm:$0xff]
    %v75 = vld [vmem:[#allocation5 + $0x8] sm:$0xff]
    %v76 = vlog2.pop %v72
    %v77 = vmul.f32 %v76, 0.6931472
    %v78 = vlog2.pop %v73
    %v79 = vmul.f32 %v78, 0.6931472
    %v80 = vmax.f32 %v77, -100.0
    %v81 = vmax.f32 %v79, -100.0
    %v82 = vsub.f32 1.0, %v72
    %v83 = vsub.f32 1.0, %v73
    %v84 = vlog2.pop %v82
    %v85 = vmul.f32 %v84, 0.6931472
    %v86 = vlog2.pop %v83
    %v87 = vmul.f32 %v86, 0.6931472
    %v88 = vmax.f32 %v85, -100.0
    %v89 = vmax.f32 %v87, -100.0
    %v90 = vmul.f32 %v74, %v80
    %v91 = vmul.f32 %v75, %v81
    %v92 = vsub.f32 1.0, %v74
    %v93 = vsub.f32 1.0, %v75
    %v94 = vmul.f32 %v92, %v88
    %v95 = vmul.f32 %v93, %v89
    %v96 = vadd.f32 %v90, %v94
    %v97 = vadd.f32 %v91, %v95
    %v98 = vsub.f32 0.0, %v96
    %v99 = vsub.f32 0.0, %v97
    %v100 = vsub.f32 0.0, %v98
    %v101 = vsub.f32 0.0, %v99
    %v102 = vmul.f32 %v100, 1.442695
    %v103 = vpow.pop %v102
    %v104 = vmul.f32 %v101, 1.442695
    %v105 = vpow.pop %v104
    %v106 = vsub.f32 1.0, %v103
    %v107 = vsub.f32 1.0, %v105
    %v108 = vmul.f32 %v106, %v106
    %v109 = vmul.f32 %v107, %v107
    %v110 = vmul.f32 %v108, 0.25
    %v111 = vmul.f32 %v109, 0.25
    %v112 = vmul.f32 %v110, %v98
    %v113 = vmul.f32 %v111, %v99
    %v114 = vstv %s71
    %v115 = vadd.s32 %v114, %v66
    %v116 = vadd.s32 %v114, %v67
    %v117 = vmul.u32 %v115, 128
    %v118 = vmul.u32 %v116, 128
    %v119 = vadd.s32 %v117, %v69
    %v120 = vadd.s32 %v118, %v69
    %vm121 = vcmp.lt.s32.totalorder %v119, 2048
    %vm122 = vcmp.lt.s32.totalorder %v120, 2048
    %v123 = vsel %vm121, %v112, 0.0
    %v124 = vsel %vm122, %v113, 0.0
    %v125 = vld [vmem:[#allocation7] sm:$0xff]
    %v126 = vadd.f32 %v123, %v124
    %v127 = vadd.f32 %v125, %v126
    %128 = vst [vmem:[#allocation7] sm:$0xff] %v127
    // Predicated region
    $region22: #{tpu_custom_call.1} parent=1 // pred_check
      _
    $region23: #{tpu_custom_call.1} parent=1 // pred_check_branch
      %130 = sbr.rel (0) target = $region25
    $region24: #{tpu_custom_call.1} parent=1 // pred_region
      %s132 = ssub.s32 128, 128
      %133 = vsyncadd [#allocation4], %s132
      %s135 = sshll.u32 [#allocation7], 4
      %s136 = int_to_ptr.vmem [resolvable:$true] %s135
      %138 = dma.vmem_to_hbm [thread:$0]  %s136, 128, %s2, [#allocation4]
    $region25: #{tpu_custom_call.1} parent=1 // pred_fallthru
      _
    // Predicated region
    $region26: #{tpu_custom_call.1} parent=1 // pred_check
      _
    $region27: #{tpu_custom_call.1} parent=1 // pred_check_branch
      %140 = sbr.rel (0) target = $region29
    $region28: #{tpu_custom_call.1} parent=1 // pred_region
      %141 = dma.done [#allocation4], 128
    $region29: #{tpu_custom_call.1} parent=1 // pred_fallthru
      _
    %142 = vsyncpa [#allocation3], 1
    %143 = vsyncpa [#allocation6], 1
    %144 = vsyncpa [#allocation4], 1

</llo_original>
